<compile_context>
chip_gen: v5e
topology: v5e:2x2
jax: 0.10.0
libtpu: 0.0.40
codegen_flags: <defaults>
</compile_context>

<pallas_src>
import jax
import jax.numpy as jnp
from jax.experimental import pallas as pl
from jax.experimental.pallas import tpu as pltpu


def _att_cls_kernel(x_ref, cls_ref, m_ref, out_ref):
    x = x_ref[...]                                  # (TB, N0, C) bf16
    tb, n0, c = x.shape

    # p[b, :] = scale * X_full[b, 1, :] @ Wq^T @ Wk   (M precomposed, scale folded in)
    p = jnp.dot(x[:, 1, :], m_ref[...],
                preferred_element_type=jnp.float32)            # (TB, C) f32

    # score against data key j (X_full row j, j >= 1) = p[b] . x[b, j, :]
    s_all = jnp.sum(p[:, None, :] * x.astype(jnp.float32), axis=-1)   # (TB, N0) f32
    # score against the cls key (appended last in X_full)
    s_cls = jnp.sum(p * cls_ref[...], axis=-1, keepdims=True)         # (TB, 1)  f32

    # scores layout: [key j=1 .. j=N0-1, cls]  -> two slice-stores, no concat.
    out_ref[:, : n0 - 1] = s_all[:, 1:].astype(out_ref.dtype)
    out_ref[:, n0 - 1:] = s_cls.astype(out_ref.dtype)


def _pick_block_b(batch, n0, c, *, vmem_budget_bytes=36 << 20):
    """Largest legal batch block whose per-step working set fits the VMEM budget.

    Legal = divisor of `batch` that is the full batch or a multiple of 8 (keeps
    the (block_b, N0) x/out blocks layout-friendly on every chip generation).
    Working set per sequence: double-buffered bf16 x block + ~3x f32 temporaries
    (p-broadcast product / upcast) produced inside the kernel.  Budget is sized
    for v7x's 64 MiB physical VMEM; v5e/v6e have more headroom.
    """
    per_seq_bytes = n0 * c * (2 * 2 + 3 * 4)
    max_fit = max(1, vmem_budget_bytes // per_seq_bytes)
    legal = [d for d in range(1, batch + 1)
             if batch % d == 0 and (d == batch or d % 8 == 0)]
    fitting = [d for d in legal if d <= max_fit]
    if not fitting:
        return min(legal)
    best = max(fitting)
    # v7x has two TensorCores: prefer leaving the "parallel" grid axis with >= 2
    # steps, as long as each step still feeds the MXU with >= 256 rows.
    multi = [d for d in fitting if batch // d >= 2 and d >= 256]
    if multi:
        best = max(multi)
    return best


def att_cls_scores_forward(x, cls_embedding, qkv_weight, *, num_heads=8,
                           qk_scale=None, block_b=None):
    """Forward pass of Att_cls_scores.

    x:             (B, N0, C) float (any float dtype; streamed to kernel as bf16)
    cls_embedding: (1, 1, C)  float
    qkv_weight:    (2*C, C)   float, PyTorch nn.Linear (out_features, in_features)
    returns:       (B, N0)    float32 scores
    """
    B, N0, C = x.shape
    assert N0 >= 2, "query row index 1 must be a data row (module assumes seq >= 2)"
    assert C % num_heads == 0
    head_dim = C // num_heads
    scale = float(qk_scale) if qk_scale is not None else head_dim ** (-0.5)

    if block_b is None:
        block_b = _pick_block_b(B, N0, C)
    assert B % block_b == 0 and (block_b == B or block_b % 8 == 0)

    # Precompose M = scale * Wq^T @ Wk in f32, ship as bf16 (one C x C weight block).
    wq = qkv_weight[:C, :].astype(jnp.float32)
    wk = qkv_weight[C:, :].astype(jnp.float32)
    m = (scale * (wq.T @ wk)).astype(jnp.bfloat16)              # (C, C)
    cls2d = cls_embedding.reshape(1, C).astype(jnp.float32)     # tiny, keep f32
    x_bf16 = x.astype(jnp.bfloat16)                             # halves x HBM traffic

    fn = pl.pallas_call(
        _att_cls_kernel,
        out_shape=jax.ShapeDtypeStruct((B, N0), jnp.float32),
        grid_spec=pltpu.PrefetchScalarGridSpec(
            num_scalar_prefetch=0,
            grid=(B // block_b,),
            in_specs=[
                pl.BlockSpec((block_b, N0, C), lambda i: (i, 0, 0)),  # x (batch-blocked)
                pl.BlockSpec((1, C), lambda i: (0, 0)),               # cls (grid-invariant)
                pl.BlockSpec((C, C), lambda i: (0, 0)),               # M   (grid-invariant)
            ],
            out_specs=pl.BlockSpec((block_b, N0), lambda i: (i, 0)),
        ),
        compiler_params=pltpu.CompilerParams(
            dimension_semantics=("parallel",),
            vmem_limit_bytes=48 << 20,   # safe on v7x (64 MiB physical); plenty on v5e/v6e
        ),
    )
    return fn(x_bf16, cls2d, m)


def _reference(x, cls_embedding, qkv_weight, *, num_heads=8, qk_scale=None):
    """Pure-JAX f32 mirror of the PyTorch forward (eval mode, attn_drop=0)."""
    B, N0, C = x.shape
    hd = C // num_heads
    scale = qk_scale if qk_scale is not None else hd ** (-0.5)
    cls = jnp.broadcast_to(cls_embedding.reshape(1, 1, C), (B, 1, C))
    xf = jnp.concatenate([x, cls], axis=1)                               # (B, N, C), N = N0+1
    N = N0 + 1
    qkv = (xf @ qkv_weight.T).reshape(B, N, 2, num_heads, hd).transpose(2, 0, 3, 1, 4)
    q, k = qkv[0], qkv[1]                                                # (B, H, N, hd)
    attn = jnp.einsum('bhqd,bhkd->bhqk', q, k)[:, :, :, 1:] * scale      # (B, H, N, N-1)
    attn = attn[:, :, 1, :]                                              # dropout(p=0) = identity
    return jnp.sum(attn, axis=1)                                         # (B, N-1)


if __name__ == "__main__":
    key = jax.random.PRNGKey(0)
    k_x, k_cls, k_w = jax.random.split(key, 3)

    B, N0, C, H = 2, 8, 128, 8
    x = jax.random.normal(k_x, (B, N0, C), dtype=jnp.float32)
    cls_embedding = jax.random.normal(k_cls, (1, 1, C), dtype=jnp.float32)
    qkv_weight = (0.05 * jax.random.normal(k_w, (2 * C, C))).astype(jnp.float32)

    scores = att_cls_scores_forward(x, cls_embedding, qkv_weight, num_heads=H)
    scores = jax.block_until_ready(scores)

    ref = _reference(x, cls_embedding, qkv_weight, num_heads=H)
    assert scores.shape == (B, N0)
    assert bool(jnp.all(jnp.isfinite(scores)))
    err = float(jnp.max(jnp.abs(scores - ref)))
    assert bool(jnp.allclose(scores, ref, rtol=5e-2, atol=5e-2)), err
    print("KERNEL_OK")
</pallas_src>

<mosaic_0001>
module attributes {stable_mosaic.version = 11 : i64} {
  func.func @_att_cls_kernel(%arg0: i32, %arg1: memref<2x8x128xbf16, #tpu.memory_space<vmem>>, %arg2: memref<1x128xf32, #tpu.memory_space<vmem>>, %arg3: memref<128x128xbf16, #tpu.memory_space<vmem>>, %arg4: memref<2x8xf32, #tpu.memory_space<vmem>>) attributes {dimension_semantics = [#tpu.dimension_semantics<parallel>], iteration_bounds = array<i64: 1>, scalar_prefetch = 0 : i64, scratch_operands = 0 : i64, tpu.core_type = #tpu.core_type<tc>, window_params = [{transform_indices = @transform_0, window_bounds = array<i64: 2, 8, 128>}, {pipeline_mode = #tpu.pipeline_mode<synchronous>, transform_indices = @transform_1, window_bounds = array<i64: 1, 128>}, {pipeline_mode = #tpu.pipeline_mode<synchronous>, transform_indices = @transform_2, window_bounds = array<i64: 128, 128>}, {transform_indices = @transform_3, window_bounds = array<i64: 2, 8>}]} {
    %c0 = arith.constant 0 : index
    %c0_0 = arith.constant 0 : index
    %c0_1 = arith.constant 0 : index
    %0 = vector.load %arg1[%c0, %c0_0, %c0_1] : memref<2x8x128xbf16, #tpu.memory_space<vmem>>, vector<2x8x128xbf16>
    %1 = vector.extract_strided_slice %0 {offsets = [0, 1, 0], sizes = [2, 1, 128], strides = [1, 1, 1]} : vector<2x8x128xbf16> to vector<2x1x128xbf16>
    %2 = vector.shape_cast %1 : vector<2x1x128xbf16> to vector<2x128xbf16>
    %c0_2 = arith.constant 0 : index
    %c0_3 = arith.constant 0 : index
    %3 = vector.load %arg3[%c0_2, %c0_3] : memref<128x128xbf16, #tpu.memory_space<vmem>>, vector<128x128xbf16>
    %cst = arith.constant dense<0.000000e+00> : vector<2x128xf32>
    %4 = tpu.matmul %2, %3, %cst {dimension_numbers = #tpu.dot_dimension_numbers<[1], [0], [0], [1], [0, 0, 1, 1], [], []>} : vector<2x128xbf16>, vector<128x128xbf16>, vector<2x128xf32> -> vector<2x128xf32>
    %5 = vector.shape_cast %4 : vector<2x128xf32> to vector<2x1x128xf32>
    %6 = arith.extf %0 : vector<2x8x128xbf16> to vector<2x8x128xf32>
    %7 = vector.broadcast %5 : vector<2x1x128xf32> to vector<2x8x128xf32>
    %8 = arith.mulf %7, %6 : vector<2x8x128xf32>
    %cst_4 = arith.constant dense<0.000000e+00> : vector<2x8xf32>
    %9 = vector.multi_reduction <add>, %8, %cst_4 [2] : vector<2x8x128xf32> to vector<2x8xf32>
    %c0_5 = arith.constant 0 : index
    %c0_6 = arith.constant 0 : index
    %10 = vector.load %arg2[%c0_5, %c0_6] : memref<1x128xf32, #tpu.memory_space<vmem>>, vector<1x128xf32>
    %11 = vector.broadcast %10 : vector<1x128xf32> to vector<2x128xf32>
    %12 = arith.mulf %4, %11 : vector<2x128xf32>
    %cst_7 = arith.constant dense<0.000000e+00> : vector<2xf32>
    %13 = vector.multi_reduction <add>, %12, %cst_7 [1] : vector<2x128xf32> to vector<2xf32>
    %14 = vector.shape_cast %13 : vector<2xf32> to vector<2x1xf32>
    %15 = vector.extract_strided_slice %9 {offsets = [0, 1], sizes = [2, 7], strides = [1, 1]} : vector<2x8xf32> to vector<2x7xf32>
    %c0_8 = arith.constant 0 : index
    %c0_9 = arith.constant 0 : index
    %16 = vector.load %arg4[%c0_8, %c0_9] : memref<2x8xf32, #tpu.memory_space<vmem>>, vector<2x7xf32>
    tpu.vector_store %arg4[%c0_8, %c0_9], %15 {strides = array<i32>} : memref<2x8xf32, #tpu.memory_space<vmem>>, vector<2x7xf32>,
    %c0_10 = arith.constant 0 : index
    %c7 = arith.constant 7 : index
    %17 = vector.load %arg4[%c0_10, %c7] : memref<2x8xf32, #tpu.memory_space<vmem>>, vector<2x1xf32>
    tpu.vector_store %arg4[%c0_10, %c7], %14 {strides = array<i32>} : memref<2x8xf32, #tpu.memory_space<vmem>>, vector<2x1xf32>,
    return
  }
  func.func @transform_0(%arg0: i32) -> (i32, i32, i32) {
    %c0_i32 = arith.constant 0 : i32
    %c0_i32_0 = arith.constant 0 : i32
    %c0_i32_1 = arith.constant 0 : i32
    return %arg0, %c0_i32, %c0_i32_0 : i32, i32, i32
  }
  func.func @transform_1(%arg0: i32) -> (i32, i32) {
    %c0_i32 = arith.constant 0 : i32
    %c0_i32_0 = arith.constant 0 : i32
    %c0_i32_1 = arith.constant 0 : i32
    return %c0_i32, %c0_i32_0 : i32, i32
  }
  func.func @transform_2(%arg0: i32) -> (i32, i32) {
    %c0_i32 = arith.constant 0 : i32
    %c0_i32_0 = arith.constant 0 : i32
    %c0_i32_1 = arith.constant 0 : i32
    return %c0_i32, %c0_i32_0 : i32, i32
  }
  func.func @transform_3(%arg0: i32) -> (i32, i32) {
    %c0_i32 = arith.constant 0 : i32
    %c0_i32_0 = arith.constant 0 : i32
    return %arg0, %c0_i32 : i32, i32
  }
}

</mosaic_0001>

<llo_original>
// kernel: tpu_custom_call.1
$region0: #{tpu_custom_call.1}
  #allocation0 [shape = 'u32[]', space=smem, size = 0x4, offset = 0x4, fixed_abs, tag = 'smem constant byte address 0x4 - core index']
  #allocation1 [shape = 'u32[72,128]{1,0:T(1,128)}', space=vmem, size = 0x9000, scoped, tag = 'internal scratch']
  %s0 = inlined_call_operand.hbm [shape: bf16[2,8,128], index: 0, kind: input, shape index: {}]
  %s1 = inlined_call_operand.hbm [shape: f32[1,128], index: 1, kind: input, shape index: {}]
  %s2 = inlined_call_operand.hbm [shape: bf16[128,128], index: 2, kind: input, shape index: {}]
  %s3 = inlined_call_operand.hbm [shape: f32[2,8], index: 3, kind: output, shape index: {}]
  %s4 = sld [smem:[#allocation0]]
  $region34: #{tpu_custom_call.1} parent=0
    _
  %s6 = ssub.s32 1, %s4
  %s7 = scalar_select 0, %s6, %s4
  $region1: #{tpu_custom_call.1} parent=0
    #allocation2 [shape = 'u8[4096]{0}', space=vmem, size = 0x1000, scoped, tag = 'input window, operand 0, single buffered']
    #allocation3 [shape = 's32[1]{0}', space=sflag, size = 0x4, scoped, tag = 'scoped memory for tpu_custom_call.1']
    #allocation4 [shape = 's32[1]{0}', space=sflag, size = 0x4, scoped, tag = 'scoped memory for tpu_custom_call.1']
    #allocation5 [shape = 'u8[512]{0}', space=vmem, size = 0x400, scoped, tag = 'input window, operand 1, single buffered']
    #allocation6 [shape = 's32[1]{0}', space=sflag, size = 0x4, scoped, tag = 'scoped memory for tpu_custom_call.1']
    #allocation7 [shape = 'u8[32768]{0}', space=vmem, size = 0x8000, scoped, tag = 'input window, operand 2, single buffered']
    #allocation8 [shape = 'u8[1024]{0}', space=vmem, size = 0x400, scoped, tag = 'output window, operand 0, single buffered']
    %8 = vsyncpa [#allocation3], 0
    %9 = vsyncpa [#allocation6], 0
    %10 = vsyncpa [#allocation4], 0
    // Predicated region
    $region2: #{tpu_custom_call.1} parent=1 // pred_check
      _
    $region3: #{tpu_custom_call.1} parent=1 // pred_check_branch
      %12 = sbr.rel (0) target = $region5
    $region4: #{tpu_custom_call.1} parent=1 // pred_region
      %14 = vsyncadd [#allocation3], 0
      %s15 = sshll.u32 %s0, 4
      %s16 = int_to_ptr.hbm [resolvable:$true] %s15
      %s17 = sshll.u32 [#allocation2], 4
      %s18 = int_to_ptr.vmem [resolvable:$true] %s17
      %23 = dma.hbm_to_vmem [thread:$0]  %s16, 128, %s18, [#allocation3], 64, 64, 4
    $region5: #{tpu_custom_call.1} parent=1 // pred_fallthru
      _
    // Predicated region
    $region6: #{tpu_custom_call.1} parent=1 // pred_check
      _
    $region7: #{tpu_custom_call.1} parent=1 // pred_check_branch
      %25 = sbr.rel (0) target = $region9
    $region8: #{tpu_custom_call.1} parent=1 // pred_region
      %27 = vsyncadd [#allocation6], 0
      %s29 = sshll.u32 %s1, 4
      %s30 = int_to_ptr.hbm [resolvable:$true] %s29
      %s31 = sshll.u32 [#allocation5], 4
      %s32 = int_to_ptr.vmem [resolvable:$true] %s31
      %34 = dma.hbm_to_vmem [thread:$0]  %s30, 16, %s32, [#allocation6]
    $region9: #{tpu_custom_call.1} parent=1 // pred_fallthru
      _
    // Predicated region
    $region10: #{tpu_custom_call.1} parent=1 // pred_check
      _
    $region11: #{tpu_custom_call.1} parent=1 // pred_check_branch
      %36 = sbr.rel (0) target = $region13
    $region12: #{tpu_custom_call.1} parent=1 // pred_region
      %38 = vsyncadd [#allocation6], 0
      %s39 = sshll.u32 %s2, 4
      %s40 = int_to_ptr.hbm [resolvable:$true] %s39
      %s41 = sshll.u32 [#allocation7], 4
      %s42 = int_to_ptr.vmem [resolvable:$true] %s41
      %47 = dma.hbm_to_vmem [thread:$0]  %s40, 1024, %s42, [#allocation6], 64, 64, 4
    $region13: #{tpu_custom_call.1} parent=1 // pred_fallthru
      _
    // Predicated region
    $region14: #{tpu_custom_call.1} parent=1 // pred_check
      _
    $region15: #{tpu_custom_call.1} parent=1 // pred_check_branch
      %49 = sbr.rel (0) target = $region17
    $region16: #{tpu_custom_call.1} parent=1 // pred_region
      %51 = dma.done [#allocation3], 128
    $region17: #{tpu_custom_call.1} parent=1 // pred_fallthru
      _
    // Predicated region
    $region18: #{tpu_custom_call.1} parent=1 // pred_check
      _
    $region19: #{tpu_custom_call.1} parent=1 // pred_check_branch
      %53 = sbr.rel (0) target = $region21
    $region20: #{tpu_custom_call.1} parent=1 // pred_region
      %55 = dma.done [#allocation6], 16
    $region21: #{tpu_custom_call.1} parent=1 // pred_fallthru
      _
    // Predicated region
    $region22: #{tpu_custom_call.1} parent=1 // pred_check
      _
    $region23: #{tpu_custom_call.1} parent=1 // pred_check_branch
      %57 = sbr.rel (0) target = $region25
    $region24: #{tpu_custom_call.1} parent=1 // pred_region
      %59 = dma.done [#allocation6], 1024
    $region25: #{tpu_custom_call.1} parent=1 // pred_fallthru
      _
    %v60 = vld [vmem:[#allocation2] sm:$0xf]
    %v61 = vld [vmem:[#allocation2 + $0x4] sm:$0xf]
    %v62 = vld [vmem:[#allocation7] sm:$0xf]
    %v63 = vld [vmem:[#allocation7 + $0x4] sm:$0xf]
    %v64 = vld [vmem:[#allocation7 + $0x8] sm:$0xf]
    %v65 = vld [vmem:[#allocation7 + $0xc] sm:$0xf]
    %v66 = vld [vmem:[#allocation7 + $0x10] sm:$0xf]
    %v67 = vld [vmem:[#allocation7 + $0x14] sm:$0xf]
    %v68 = vld [vmem:[#allocation7 + $0x18] sm:$0xf]
    %v69 = vld [vmem:[#allocation7 + $0x1c] sm:$0xf]
    %v70 = vld [vmem:[#allocation7 + $0x20] sm:$0xf]
    %v71 = vld [vmem:[#allocation7 + $0x24] sm:$0xf]
    %v72 = vld [vmem:[#allocation7 + $0x28] sm:$0xf]
    %v73 = vld [vmem:[#allocation7 + $0x2c] sm:$0xf]
    %v74 = vld [vmem:[#allocation7 + $0x30] sm:$0xf]
    %v75 = vld [vmem:[#allocation7 + $0x34] sm:$0xf]
    %v76 = vld [vmem:[#allocation7 + $0x38] sm:$0xf]
    %v77 = vld [vmem:[#allocation7 + $0x3c] sm:$0xf]
    %v80 = vunpack.c.l.b16 %v60
    %v81 = vunpack.c.l.b16 %v61
    %v82 = vpack.c.b16 %v80, %v80
    %v83 = vpack.c.b16 %v81, %v81
    %v84 = vunpack.c.l.b16 %v82
    %v85 = vunpack.c.l.b16 %v83
    %v86 = vrot.slane %v84, 1
    %vm87 = vcmask 1041409
    %v88 = vsel %vm87, %v85, %v86
    %v89 = vpack.c.b16 %v88, %v88
    %v107 = vunpack.c.l.b16 %v62
    %v108 = vunpack.c.l.b16 %v63
    %v109 = vunpack.c.l.b16 %v64
    %v110 = vunpack.c.l.b16 %v65
    %v111 = vunpack.c.l.b16 %v66
    %v112 = vunpack.c.l.b16 %v67
    %v113 = vunpack.c.l.b16 %v68
    %v114 = vunpack.c.l.b16 %v69
    %v115 = vunpack.c.l.b16 %v70
    %v116 = vunpack.c.l.b16 %v71
    %v117 = vunpack.c.l.b16 %v72
    %v118 = vunpack.c.l.b16 %v73
    %v119 = vunpack.c.l.b16 %v74
    %v120 = vunpack.c.l.b16 %v75
    %v121 = vunpack.c.l.b16 %v76
    %v122 = vunpack.c.l.b16 %v77
    %v123 = vpack.c.b16 %v108, %v107
    %v124 = vpack.c.b16 %v110, %v109
    %v125 = vpack.c.b16 %v112, %v111
    %v126 = vpack.c.b16 %v114, %v113
    %v127 = vpack.c.b16 %v116, %v115
    %v128 = vpack.c.b16 %v118, %v117
    %v129 = vpack.c.b16 %v120, %v119
    %v130 = vpack.c.b16 %v122, %v121
    %139 = vmatpush.bf16.msra.mxu0 %v130
    %140 = vmatpush.bf16.msra.mxu0 %v129
    %141 = vmatpush.bf16.msra.mxu0 %v128
    %142 = vmatpush.bf16.msra.mxu0 %v127
    %143 = vmatpush.bf16.msra.mxu0 %v126
    %144 = vmatpush.bf16.msra.mxu0 %v125
    %145 = vmatpush.bf16.msra.mxu0 %v124
    %146 = vmatpush.bf16.msra.mxu0 %v123
    %147 = vmatmul.bf16.gmra.mxu0 %v89
    %v148 = vpop.f32.mrf.mxu0
    %v149 = vadd.f32 0.0, %v148
    %v150 = vpop.f32.mrf.mxu0
    %151 = vdwg.mxu0
    %v153 = vrot.slane %v149, 1
    %v154 = vunpack.c.l.bf16 %v60
    %v155 = vunpack.c.l.bf16 %v61
    %v156 = vperm.slane %v149, 0
    %v157 = vperm.slane %v153, 0
    %v160 = vmul.f32 %v156, %v154
    %v161 = vmul.f32 %v157, %v155
    %162 = vadd.xlane.f32.xlu0 %v160
    %v163 = vpop.xlane.xlu0 %162
    %164 = vadd.xlane.f32.xlu0 %v161
    %v165 = vpop.xlane.xlu0 %164
    %v166 = vld [vmem:[#allocation5] sm:$0x1]
    %v168 = vperm.slane %v166, 0
    %v170 = vmul.f32 %v149, %v168
    %vm171 = vcmask 1041408
    %v172 = vsel %vm171, %v170, 0.0
    %173 = vadd.xlane.f32.xlu0 %v172
    %v174 = vpop.xlane.xlu0 %173
    %v177 = vlaneseq
    %v178 = vand.u32 %v177, 127
    %v179 = vadd.s32 %v178, 1
    %v180 = vperm.slane %v163, %v179
    %v181 = vperm.slane %v165, %v179
    %vm182 = vcmask 1042434
    %v183 = vsel %vm182, %v181, %v180
    %vm185 = vcmask 51201
    %186 = vst.msk [vmem:[#allocation8 - $0x1] sm:$0x6] %vm185, %v183
    %vm187 = vcmask 58424
    %188 = vst.msk [vmem:[#allocation8] sm:$0x3] %vm187, %v174
    // Predicated region
    $region26: #{tpu_custom_call.1} parent=1 // pred_check
      _
    $region27: #{tpu_custom_call.1} parent=1 // pred_check_branch
      %190 = sbr.rel (0) target = $region29
    $region28: #{tpu_custom_call.1} parent=1 // pred_region
      %192 = vsyncadd [#allocation4], 0
      %s194 = sshll.u32 [#allocation8], 4
      %s195 = int_to_ptr.vmem [resolvable:$true] %s194
      %s196 = sshll.u32 %s3, 4
      %s197 = int_to_ptr.hbm [resolvable:$true] %s196
      %199 = dma.vmem_to_hbm [thread:$0]  %s195, 32, %s197, [#allocation4]
    $region29: #{tpu_custom_call.1} parent=1 // pred_fallthru
      _
    // Predicated region
    $region30: #{tpu_custom_call.1} parent=1 // pred_check
      _
    $region31: #{tpu_custom_call.1} parent=1 // pred_check_branch
      %201 = sbr.rel (0) target = $region33
    $region32: #{tpu_custom_call.1} parent=1 // pred_region
      %203 = dma.done [#allocation4], 32
    $region33: #{tpu_custom_call.1} parent=1 // pred_fallthru
      _
    %204 = vsyncpa [#allocation3], 1
    %205 = vsyncpa [#allocation6], 1
    %206 = vsyncpa [#allocation4], 1

</llo_original>
